<compile_context>
chip_gen: v6e
topology: v6e:2x2x1
jax: 0.10.0
libtpu: 0.0.40
codegen_flags: <defaults>
</compile_context>

<pallas_src>
import math

import jax
import jax.numpy as jnp
from jax.experimental import pallas as pl
from jax.experimental.pallas import tpu as pltpu

NEGATIVE_SLOPE = 0.2
SQRT2 = math.sqrt(2.0)
NEG_TIMES_SQRT2 = NEGATIVE_SLOPE * SQRT2

_MIB = 1024 * 1024


def _scaled_leaky_relu_kernel(x_ref, o_ref):
    x = x_ref[...]
    pos = jnp.asarray(SQRT2, x.dtype)
    neg = jnp.asarray(NEG_TIMES_SQRT2, x.dtype)
    # Single VPU multiply per element (scale selected by sign).
    o_ref[...] = (x * jnp.where(x >= 0, pos, neg)).astype(o_ref.dtype)


def _scaled_leaky_relu_xla(x):
    # Fused single-pass XLA elementwise, used only for ragged element counts.
    pos = jnp.asarray(SQRT2, x.dtype)
    neg = jnp.asarray(NEG_TIMES_SQRT2, x.dtype)
    return x * jnp.where(x >= 0, pos, neg)


def _round_up(v, m):
    return ((v + m - 1) // m) * m


def _tpu_vmem_capacity_bytes(default=64 * _MIB):
    # Per-generation sizing; fall back to the conservative v7x value (64 MiB).
    try:
        return int(pltpu.get_tpu_info().vmem_capacity_bytes)
    except Exception:
        return default


def scaled_leaky_relu(x, *, max_block_cols=2048):
    """Elementwise scaled leaky ReLU via Pallas. Works for any input shape."""
    orig_shape = x.shape
    dtype = x.dtype
    total = x.size
    if total == 0:
        return x

    itemsize = jnp.dtype(dtype).itemsize
    # Sublane packing multiple: f32 -> 8, 16-bit -> 16, 8-bit -> 32.
    sublane = max(8, 32 // max(1, itemsize))

    # Widest power-of-two lane width (multiple of 128, <= max_block_cols) that
    # divides the element count exactly -> no padding, no final slice.
    cols = None
    c = max_block_cols
    while c >= 128:
        if total % c == 0:
            cols = c
            break
        c //= 2
    if cols is None:
        # Ragged size: a pad + opaque pallas_call + slice does ~3x the HBM
        # traffic of one fused pass, so use plain XLA here (perf review rec.).
        return _scaled_leaky_relu_xla(x)

    rows = total // cols
    x2d = x.reshape(rows, cols)

    # Per-generation tile & VMEM budget.  Double-buffered in+out footprint is
    # 4x tile; keep headroom above that but stay well under physical VMEM.
    vmem_cap = _tpu_vmem_capacity_bytes()
    target_block_bytes = min(16 * _MIB, max(4 * _MIB, vmem_cap // 8))
    vmem_limit_bytes = int(min(vmem_cap - vmem_cap // 4,
                               4 * target_block_bytes + 16 * _MIB))

    row_bytes = cols * itemsize
    block_rows = max(sublane,
                     (target_block_bytes // row_bytes) // sublane * sublane)

    if rows < 2 * sublane:
        # Too small to split: one full-extent block (always layout-legal).
        br = rows
    else:
        # Even step count (>= 2, prefer 4 for mid-size inputs) so both v7x
        # TensorCores get balanced work and each core has >= 2 steps to
        # overlap input prefetch with output writeback.
        steps = pl.cdiv(rows, block_rows)
        if steps < 4 and rows >= 4 * sublane:
            steps = 4
        elif steps < 2:
            steps = 2
        if steps % 2:
            steps += 1
        br = min(block_rows, _round_up(pl.cdiv(rows, steps), sublane))

    grid = (pl.cdiv(rows, br),)

    out2d = pl.pallas_call(
        _scaled_leaky_relu_kernel,
        out_shape=jax.ShapeDtypeStruct((rows, cols), dtype),
        grid_spec=pl.GridSpec(
            grid=grid,
            in_specs=[pl.BlockSpec((br, cols), lambda i: (i, 0))],
            out_specs=pl.BlockSpec((br, cols), lambda i: (i, 0)),
        ),
        compiler_params=pltpu.CompilerParams(
            dimension_semantics=("parallel",),
            vmem_limit_bytes=vmem_limit_bytes,
        ),
    )(x2d)

    return out2d.reshape(orig_shape)


def scaled_leaky_relu_ref(x):
    return jnp.where(x >= 0, x, x * NEGATIVE_SLOPE) * SQRT2


if __name__ == "__main__":
    key = jax.random.PRNGKey(0)

    # NCHW input at the module's small example shape: batch=2, channels=4, 16x16.
    x = jax.random.normal(key, (2, 4, 16, 16), dtype=jnp.float32)
    out = jax.block_until_ready(scaled_leaky_relu(x))

    ref = scaled_leaky_relu_ref(x)
    assert out.shape == x.shape
    assert out.dtype == x.dtype
    assert jnp.allclose(out, ref, atol=1e-6, rtol=1e-5), "mismatch vs reference (main)"

    k1, k2, k3 = jax.random.split(key, 3)

    # Multi-row, single-block Pallas path.
    x2 = jax.random.normal(k1, (2, 8, 32, 32), dtype=jnp.float32)
    out2 = jax.block_until_ready(scaled_leaky_relu(x2))
    assert jnp.allclose(out2, scaled_leaky_relu_ref(x2), atol=1e-6, rtol=1e-5)

    # Split-grid Pallas path (rows=64 -> 4 parallel grid steps).
    x3 = jax.random.normal(k2, (4, 8, 64, 64), dtype=jnp.float32)
    out3 = jax.block_until_ready(scaled_leaky_relu(x3))
    assert jnp.allclose(out3, scaled_leaky_relu_ref(x3), atol=1e-6, rtol=1e-5)

    # Ragged element count -> fused XLA fallback path.
    x4 = jax.random.normal(k3, (3, 5, 7, 11), dtype=jnp.float32)
    out4 = jax.block_until_ready(scaled_leaky_relu(x4))
    assert jnp.allclose(out4, scaled_leaky_relu_ref(x4), atol=1e-6, rtol=1e-5)

    print("KERNEL_OK")
</pallas_src>

<mosaic_0001>
module attributes {stable_mosaic.version = 11 : i64} {
  func.func @_scaled_leaky_relu_kernel(%arg0: i32, %arg1: memref<1x2048xf32, #tpu.memory_space<vmem>>, %arg2: memref<1x2048xf32, #tpu.memory_space<vmem>>) attributes {dimension_semantics = [#tpu.dimension_semantics<parallel>], iteration_bounds = array<i64: 1>, scalar_prefetch = 0 : i64, scratch_operands = 0 : i64, tpu.core_type = #tpu.core_type<tc>, window_params = [{transform_indices = @transform_0, window_bounds = array<i64: 1, 2048>}, {transform_indices = @transform_1, window_bounds = array<i64: 1, 2048>}]} {
    %c0 = arith.constant 0 : index
    %c0_0 = arith.constant 0 : index
    %0 = vector.load %arg1[%c0, %c0_0] : memref<1x2048xf32, #tpu.memory_space<vmem>>, vector<1x2048xf32>
    %cst = arith.constant 0.000000e+00 : f32
    %1 = vector.broadcast %cst : f32 to vector<1x2048xf32>
    %2 = arith.cmpf oge, %0, %1 : vector<1x2048xf32>
    %cst_1 = arith.constant 1.41421354 : f32
    %cst_2 = arith.constant 0.282842726 : f32
    %3 = vector.broadcast %cst_1 : f32 to vector<1x2048xf32>
    %4 = vector.broadcast %cst_2 : f32 to vector<1x2048xf32>
    %5 = arith.select %2, %3, %4 : vector<1x2048xi1>, vector<1x2048xf32>
    %6 = arith.mulf %0, %5 : vector<1x2048xf32>
    %c0_3 = arith.constant 0 : index
    %c0_4 = arith.constant 0 : index
    %7 = vector.load %arg2[%c0_3, %c0_4] : memref<1x2048xf32, #tpu.memory_space<vmem>>, vector<1x2048xf32>
    tpu.vector_store %arg2[%c0_3, %c0_4], %6 {strides = array<i32>} : memref<1x2048xf32, #tpu.memory_space<vmem>>, vector<1x2048xf32>,
    return
  }
  func.func @transform_0(%arg0: i32) -> (i32, i32) {
    %c0_i32 = arith.constant 0 : i32
    %c0_i32_0 = arith.constant 0 : i32
    return %arg0, %c0_i32 : i32, i32
  }
  func.func @transform_1(%arg0: i32) -> (i32, i32) {
    %c0_i32 = arith.constant 0 : i32
    %c0_i32_0 = arith.constant 0 : i32
    return %arg0, %c0_i32 : i32, i32
  }
}

</mosaic_0001>

<llo_original>
// kernel: tpu_custom_call.1
$region0: #{tpu_custom_call.1}
  #allocation0 [shape = 'u32[]', space=smem, size = 0x4, offset = 0x4, fixed_abs, tag = 'smem constant byte address 0x4 - core index']
  #allocation1 [shape = 'u32[144,128]{1,0:T(1,128)}', space=vmem, size = 0x12000, scoped, tag = 'internal scratch']
  %s0 = inlined_call_operand.hbm [shape: f32[1,2048], index: 0, kind: input, shape index: {}]
  %s1 = inlined_call_operand.hbm [shape: f32[1,2048], index: 1, kind: output, shape index: {}]
  %s2 = sld [smem:[#allocation0]]
  $region18: #{tpu_custom_call.1} parent=0
    _
  %s4 = ssub.s32 1, %s2
  %s5 = scalar_select 0, %s4, %s2
  $region1: #{tpu_custom_call.1} parent=0
    #allocation2 [shape = 'u8[8192]{0}', space=vmem, size = 0x2000, scoped, tag = 'input window, operand 0, single buffered']
    #allocation3 [shape = 's32[1]{0}', space=sflag, size = 0x4, scoped, tag = 'scoped memory for tpu_custom_call.1']
    #allocation4 [shape = 's32[1]{0}', space=sflag, size = 0x4, scoped, tag = 'scoped memory for tpu_custom_call.1']
    #allocation5 [shape = 'u8[8192]{0}', space=vmem, size = 0x2000, scoped, tag = 'output window, operand 0, single buffered']
    %6 = vsyncpa [#allocation3], 0
    %7 = vsyncpa [#allocation4], 0
    // Predicated region
    $region2: #{tpu_custom_call.1} parent=1 // pred_check
      _
    $region3: #{tpu_custom_call.1} parent=1 // pred_check_branch
      %9 = sbr.rel (0) target = $region5
    $region4: #{tpu_custom_call.1} parent=1 // pred_region
      %s11 = ssub.s32 256, 256
      %12 = vsyncadd [#allocation3], %s11
      %s14 = sshll.u32 [#allocation2], 4
      %s15 = int_to_ptr.vmem [resolvable:$true] %s14
      %17 = dma.hbm_to_vmem [thread:$0]  %s0, 256, %s15, [#allocation3]
    $region5: #{tpu_custom_call.1} parent=1 // pred_fallthru
      _
    // Predicated region
    $region6: #{tpu_custom_call.1} parent=1 // pred_check
      _
    $region7: #{tpu_custom_call.1} parent=1 // pred_check_branch
      %19 = sbr.rel (0) target = $region9
    $region8: #{tpu_custom_call.1} parent=1 // pred_region
      %20 = dma.done [#allocation3], 256
    $region9: #{tpu_custom_call.1} parent=1 // pred_fallthru
      _
    %v21 = vld [vmem:[#allocation2] sm:$0xff]
    %v22 = vld [vmem:[#allocation2 + $0x8] sm:$0xff]
    %vm23 = vcmp.ge.f32.partialorder %v21, 0.0
    %vm24 = vcmp.ge.f32.partialorder %v22, 0.0
    %v25 = vsel %vm23, 1.4142135, 0.28284273
    %v26 = vsel %vm24, 1.4142135, 0.28284273
    %v27 = vmul.f32 %v21, %v25
    %v28 = vmul.f32 %v22, %v26
    %29 = vst [vmem:[#allocation5] sm:$0xff] %v27
    %30 = vst [vmem:[#allocation5 + $0x8] sm:$0xff] %v28
    // Predicated region
    $region10: #{tpu_custom_call.1} parent=1 // pred_check
      _
    $region11: #{tpu_custom_call.1} parent=1 // pred_check_branch
      %32 = sbr.rel (0) target = $region13
    $region12: #{tpu_custom_call.1} parent=1 // pred_region
      %s34 = ssub.s32 256, 256
      %35 = vsyncadd [#allocation4], %s34
      %s37 = sshll.u32 [#allocation5], 4
      %s38 = int_to_ptr.vmem [resolvable:$true] %s37
      %40 = dma.vmem_to_hbm [thread:$0]  %s38, 256, %s1, [#allocation4]
    $region13: #{tpu_custom_call.1} parent=1 // pred_fallthru
      _
    // Predicated region
    $region14: #{tpu_custom_call.1} parent=1 // pred_check
      _
    $region15: #{tpu_custom_call.1} parent=1 // pred_check_branch
      %42 = sbr.rel (0) target = $region17
    $region16: #{tpu_custom_call.1} parent=1 // pred_region
      %43 = dma.done [#allocation4], 256
    $region17: #{tpu_custom_call.1} parent=1 // pred_fallthru
      _
    %44 = vsyncpa [#allocation3], 1
    %45 = vsyncpa [#allocation4], 1

</llo_original>
